<compile_context>
chip_gen: v6e
topology: v6e:2x2x1
jax: 0.10.0
libtpu: 0.0.40
codegen_flags: <defaults>
</compile_context>

<pallas_src>
import math

import numpy as np
import jax
import jax.numpy as jnp
from jax.experimental import pallas as pl
from jax.experimental.pallas import tpu as pltpu


# ---------------------------------------------------------------------------
# Pallas kernels: 1x1 conv + ReLU + pixel shuffle for one tile of (b, h) rows.
# ---------------------------------------------------------------------------
def _kernel_merged(x_ref, w_ref, b_ref, out_ref):
    # Lane-dense path (sc % 128 == 0, W % 8 == 0): one MXU matmul over all
    # s * sc output columns, then 128-aligned lane slices per row phase.
    #   x_ref  : (TILE_H * W, Cin)
    #   w_ref  : (Cin, s * sc)        phase-major columns: i*sc + j*Cout + c
    #   b_ref  : (1, s * sc)          f32
    #   out_ref: (TILE_H, s, W, sc)   bit-identical view of NHWC output rows
    tile_h, s, width, sc = out_ref.shape
    x = x_ref[...]
    if x.dtype != w_ref.dtype:
        x = x.astype(w_ref.dtype)                 # skipped when x already bf16
    y = jnp.dot(x, w_ref[...], preferred_element_type=jnp.float32)
    y = jnp.maximum(y + b_ref[...], 0.0)          # bias + ReLU in f32
    for i in range(s):                            # static unroll over row phases
        # 128-aligned lane slice; reshape only splits the leading dim (free, W%8==0).
        out_ref[:, i, :, :] = (y[:, i * sc:(i + 1) * sc]
                               .reshape(tile_h, width, sc)
                               .astype(out_ref.dtype))


def _kernel_phased(x_ref, w_ref, b_ref, out_ref):
    # Small-channel fallback (sc % 128 != 0): per-phase matmuls, minor dim sc
    # stores are masked (vst.msk) but this regime is latency-trivial anyway.
    #   x_ref  : (TILE_H * W, Cin)
    #   w_ref  : (s, Cin, sc)
    #   b_ref  : (s, 1, sc)           f32
    #   out_ref: (TILE_H, s, W, sc)
    tile_h, s, width, sc = out_ref.shape
    x = x_ref[...]
    if x.dtype != w_ref.dtype:
        x = x.astype(w_ref.dtype)
    for i in range(s):
        y = jnp.dot(x, w_ref[i], preferred_element_type=jnp.float32)
        y = jnp.maximum(y + b_ref[i], 0.0)
        out_ref[:, i, :, :] = y.reshape(tile_h, width, sc).astype(out_ref.dtype)


# ---------------------------------------------------------------------------
# Generation-aware VMEM sizing and tile picking.
# ---------------------------------------------------------------------------
def _vmem_capacity_bytes():
    """Physical VMEM per TensorCore; conservative 64 MiB fallback (v7x-safe)."""
    try:
        info = pltpu.get_tpu_info()
        cap = getattr(info, "vmem_capacity_bytes", None)
        if cap:
            return int(cap)
    except Exception:
        pass
    return 64 * 1024 * 1024


def _pick_tile_rows(total_rows, width, cin, scale, cout, *, x_itemsize,
                    out_itemsize, cast_to_compute, merged, budget_bytes):
    """Largest (b, h)-row tile whose VMEM footprint fits the budget, capped so the
    grid keeps >= ~8 (preferably even) steps; (tile * width) % 8 is guaranteed."""
    s = scale
    sc = s * cout
    lane = lambda n: -(-n // 128) * 128           # VMEM lane padding
    cin_l = lane(cin)
    sc_l = lane(sc)
    y_l = lane(s * sc) if merged else sc_l
    # VMEM bytes per (b, h) image row inside a tile:
    per_row = width * (
        2 * cin_l * x_itemsize                    # double-buffered input block
        + (2 * cin_l if cast_to_compute else 0)   # in-kernel bf16 copy of x
        + 4 * y_l                                 # live f32 matmul result
        + 2 * s * sc_l * out_itemsize             # double-buffered output block
    )
    cap_vmem = max(1, budget_bytes // per_row)
    cap_steps = -(-total_rows // 8)               # keep >= ~8 grid steps
    m = 8 // math.gcd(width, 8)                   # (tile * width) % 8 == 0
    tile = min(cap_vmem, cap_steps, total_rows)
    tile = (tile // m) * m
    if tile <= 0 or tile >= total_rows:
        return total_rows                         # single full block is always legal
    steps = -(-total_rows // tile)
    if steps % 2:                                 # prefer an even step count (2 TCs on v7x)
        alt = ((-(-total_rows // (steps + 1))) // m) * m
        if alt >= m and (-(-total_rows // alt)) % 2 == 0:
            tile = alt
    return tile


# ---------------------------------------------------------------------------
# Wrapper: grid / BlockSpec plumbing.
# ---------------------------------------------------------------------------
def pixel_shuffle_icnr(x_nhwc, w_kernel, b_kernel, *, scale=2, blur=False,
                       tile_rows=None, compute_dtype=jnp.bfloat16,
                       out_dtype=None):
    """relu(Conv1x1(x)) followed by PixelShuffle(scale), NHWC in / NHWC out.

    x_nhwc   : (B, H, W, Cin) float32 or bfloat16
    w_kernel : (scale, Cin, scale * Cout)   -- see convert_torch_params
    b_kernel : (scale, 1, scale * Cout)
    out_dtype: output dtype (default: x_nhwc.dtype); bf16 halves writeback HBM bytes.
    returns  : (B, H * scale, W * scale, Cout)
    """
    if blur:
        # TODO(synk): blur branch (ReplicationPad2d((1,0,1,0)) + AvgPool2d(2, stride=1))
        # of PixelShuffle_ICNR is not implemented in the Pallas kernel.
        raise NotImplementedError("blur=True is not supported")

    B, H, W, Cin = x_nhwc.shape
    s = scale
    assert w_kernel.shape[0] == s and w_kernel.shape[1] == Cin
    sc = w_kernel.shape[2]                     # scale * out_channels
    cout = sc // s
    assert b_kernel.shape == (s, 1, sc)

    compute_dtype = jnp.dtype(compute_dtype)
    out_dtype = jnp.dtype(out_dtype) if out_dtype is not None else jnp.dtype(x_nhwc.dtype)
    x_itemsize = jnp.dtype(x_nhwc.dtype).itemsize
    out_itemsize = out_dtype.itemsize
    cast_to_compute = jnp.dtype(x_nhwc.dtype) != compute_dtype

    total_rows = B * H
    # Lane-dense merged path: aligned i*sc lane slices and a free per-phase reshape.
    merged = (sc % 128 == 0) and (W % 8 == 0)

    vmem_cap = _vmem_capacity_bytes()
    vmem_limit = int(vmem_cap * 0.75)          # ~48 MiB on v7x, ~96 MiB on v5e/v6e
    budget = int(vmem_cap * 0.55)              # footprint target for the tile picker

    if tile_rows is not None:
        tile_h = int(tile_rows)
        if tile_h <= 0 or tile_h > total_rows:
            raise ValueError("tile_rows must be in [1, B*H]")
        if tile_h != total_rows and (tile_h * W) % 8 != 0:
            raise ValueError("tile_rows * W must be a multiple of 8 (or tile_rows == B*H)")
    else:
        tile_h = _pick_tile_rows(total_rows, W, Cin, s, cout,
                                 x_itemsize=x_itemsize, out_itemsize=out_itemsize,
                                 cast_to_compute=cast_to_compute, merged=merged,
                                 budget_bytes=budget)

    num_tiles = -(-total_rows // tile_h)       # cdiv grid; edge blocks are masked
    grid = (num_tiles,)

    # Free reinterpretation: x rows indexed by (b, h, w).
    x2 = x_nhwc.reshape(total_rows * W, Cin)

    if merged:
        # Host-side repack: (s, Cin, sc) -> (Cin, s*sc), columns ordered (i, j, c).
        w_arg = jnp.transpose(w_kernel, (1, 0, 2)).reshape(Cin, s * sc).astype(compute_dtype)
        b_arg = b_kernel.reshape(1, s * sc).astype(jnp.float32)
        kernel = _kernel_merged
    else:
        w_arg = w_kernel.astype(compute_dtype)
        b_arg = b_kernel.astype(jnp.float32)
        kernel = _kernel_phased

    cost = pl.CostEstimate(
        flops=2 * total_rows * W * Cin * s * sc,
        transcendentals=0,
        bytes_accessed=(total_rows * W * Cin * x_itemsize
                        + total_rows * s * W * sc * out_itemsize
                        + Cin * s * sc * compute_dtype.itemsize
                        + s * sc * 4),
    )

    out4 = pl.pallas_call(
        kernel,
        out_shape=jax.ShapeDtypeStruct((total_rows, s, W, sc), out_dtype),
        grid=grid,
        in_specs=[
            pl.BlockSpec((tile_h * W, Cin), lambda t: (t, 0)),
            pl.BlockSpec(memory_space=pltpu.MemorySpace.VMEM),   # weights (tiny, resident)
            pl.BlockSpec(memory_space=pltpu.MemorySpace.VMEM),   # bias    (tiny, resident)
        ],
        out_specs=pl.BlockSpec((tile_h, s, W, sc), lambda t: (t, 0, 0, 0)),
        compiler_params=pltpu.CompilerParams(
            dimension_semantics=("parallel",),     # megacore / both TCs on v7x
            vmem_limit_bytes=vmem_limit,
        ),
        cost_estimate=cost,
    )(x2, w_arg, b_arg)

    # (B*H, s, W, s*Cout) is bit-identical (row-major) to NHWC (B, H*s, W*s, Cout).
    return out4.reshape(B, H * s, W * s, cout)


# ---------------------------------------------------------------------------
# PyTorch-parameter conversion and NCHW convenience wrapper.
# ---------------------------------------------------------------------------
def convert_torch_params(conv_weight, conv_bias, out_channels, scale):
    """torch Conv2d(in, out*scale^2, 1) params -> phase-major kernel layout.

    conv_weight: (out_channels*scale^2, in_channels[, 1, 1]); output channel
    k = c*scale^2 + i*scale + j feeds output pixel (h*scale+i, w*scale+j, c).
    """
    s = scale
    w = jnp.asarray(conv_weight, jnp.float32).reshape(out_channels * s * s, -1)
    cin = w.shape[1]
    w = w.reshape(out_channels, s, s, cin)                          # (c, i, j, cin)
    w_k = jnp.transpose(w, (1, 3, 2, 0)).reshape(s, cin, s * out_channels)
    b = jnp.asarray(conv_bias, jnp.float32).reshape(out_channels, s, s)
    b_k = jnp.transpose(b, (1, 2, 0)).reshape(s, 1, s * out_channels)
    return w_k, b_k


def pixel_shuffle_icnr_nchw(x_nchw, conv_weight, conv_bias, *, out_channels,
                            scale=2, **kwargs):
    """PyTorch-interface wrapper: NCHW in / NCHW out (layout plumbing only)."""
    w_k, b_k = convert_torch_params(conv_weight, conv_bias, out_channels, scale)
    x_nhwc = jnp.transpose(x_nchw, (0, 2, 3, 1))
    out = pixel_shuffle_icnr(x_nhwc, w_k, b_k, scale=scale, **kwargs)
    return jnp.transpose(out, (0, 3, 1, 2))


# ---------------------------------------------------------------------------
# NumPy float64 reference mirroring the PyTorch module (blur=False).
# ---------------------------------------------------------------------------
def reference_nchw(x, conv_weight, conv_bias, out_channels, scale):
    x = np.asarray(x, np.float64)
    w = np.asarray(conv_weight, np.float64).reshape(out_channels * scale * scale, -1)
    b = np.asarray(conv_bias, np.float64)
    y = np.einsum('bchw,kc->bkhw', x, w) + b[None, :, None, None]
    y = np.maximum(y, 0.0)                                      # ReLU
    B, _, H, W = y.shape
    y = y.reshape(B, out_channels, scale, scale, H, W)          # (b, c, i, j, h, w)
    y = y.transpose(0, 1, 4, 2, 5, 3)                           # (b, c, h, i, w, j)
    return y.reshape(B, out_channels, H * scale, W * scale)


if __name__ == "__main__":
    key = jax.random.PRNGKey(0)
    keys = jax.random.split(key, 9)

    # --- Test 1: small channels (phased fallback path), f32 MXU, auto tile picker ---
    B, Cin, Cout, scale, H, W = 2, 16, 8, 2, 8, 8
    x1 = jax.random.normal(keys[0], (B, Cin, H, W), jnp.float32)
    w1 = 0.1 * jax.random.normal(keys[1], (Cout * scale * scale, Cin), jnp.float32)
    b1 = 0.1 * jax.random.normal(keys[2], (Cout * scale * scale,), jnp.float32)
    ref1 = reference_nchw(x1, w1, b1, Cout, scale)
    out1 = pixel_shuffle_icnr_nchw(x1, w1, b1, out_channels=Cout, scale=scale,
                                   compute_dtype=jnp.float32)
    out1 = jax.block_until_ready(out1)
    np.testing.assert_allclose(np.asarray(out1), ref1, rtol=2e-4, atol=2e-4)

    # --- Test 2: lane-dense merged path (sc = 128), bf16 in / compute / out ---
    B, Cin, Cout, scale, H, W = 2, 32, 64, 2, 8, 8
    x2 = jax.random.normal(keys[3], (B, Cin, H, W), jnp.float32)
    w2 = 0.1 * jax.random.normal(keys[4], (Cout * scale * scale, Cin), jnp.float32)
    b2 = 0.1 * jax.random.normal(keys[5], (Cout * scale * scale,), jnp.float32)
    x2_bf16 = x2.astype(jnp.bfloat16)
    ref2 = reference_nchw(np.asarray(x2_bf16.astype(jnp.float32)), w2, b2, Cout, scale)
    out2 = pixel_shuffle_icnr_nchw(x2_bf16, w2, b2, out_channels=Cout, scale=scale,
                                   out_dtype=jnp.bfloat16)
    out2 = jax.block_until_ready(out2)
    np.testing.assert_allclose(np.asarray(out2.astype(jnp.float32)), ref2,
                               rtol=2e-2, atol=2e-2)

    # --- Test 3: ragged cdiv grid (tile_rows does not divide B*H), f32 MXU ---
    B, Cin, Cout, scale, H, W = 2, 16, 8, 2, 7, 8       # B*H = 14, tile_rows = 3
    x3 = jax.random.normal(keys[6], (B, Cin, H, W), jnp.float32)
    w3 = 0.1 * jax.random.normal(keys[7], (Cout * scale * scale, Cin), jnp.float32)
    b3 = 0.1 * jax.random.normal(keys[8], (Cout * scale * scale,), jnp.float32)
    ref3 = reference_nchw(x3, w3, b3, Cout, scale)
    out3 = pixel_shuffle_icnr_nchw(x3, w3, b3, out_channels=Cout, scale=scale,
                                   tile_rows=3, compute_dtype=jnp.float32)
    out3 = jax.block_until_ready(out3)
    np.testing.assert_allclose(np.asarray(out3), ref3, rtol=2e-4, atol=2e-4)

    print("KERNEL_OK")
</pallas_src>

<mosaic_0001>
module attributes {stable_mosaic.version = 11 : i64} {
  func.func @_kernel_phased(%arg0: i32, %arg1: memref<16x16xf32, #tpu.memory_space<vmem>>, %arg2: memref<2x16x16xf32, #tpu.memory_space<vmem>>, %arg3: memref<2x1x16xf32, #tpu.memory_space<vmem>>, %arg4: memref<2x2x8x16xf32, #tpu.memory_space<vmem>>) attributes {dimension_semantics = [#tpu.dimension_semantics<parallel>], iteration_bounds = array<i64: 8>, scalar_prefetch = 0 : i64, scratch_operands = 0 : i64, tpu.core_type = #tpu.core_type<tc>, window_params = [{transform_indices = @transform_0, window_bounds = array<i64: 16, 16>}, {pipeline_mode = #tpu.pipeline_mode<synchronous>, transform_indices = @transform_1, window_bounds = array<i64: 2, 16, 16>}, {pipeline_mode = #tpu.pipeline_mode<synchronous>, transform_indices = @transform_2, window_bounds = array<i64: 2, 1, 16>}, {transform_indices = @transform_3, window_bounds = array<i64: 2, 2, 8, 16>}]} {
    %c0 = arith.constant 0 : index
    %c0_0 = arith.constant 0 : index
    %0 = vector.load %arg1[%c0, %c0_0] : memref<16x16xf32, #tpu.memory_space<vmem>>, vector<16x16xf32>
    %c0_1 = arith.constant 0 : index
    %c0_2 = arith.constant 0 : index
    %c0_3 = arith.constant 0 : index
    %1 = vector.load %arg2[%c0_1, %c0_2, %c0_3] : memref<2x16x16xf32, #tpu.memory_space<vmem>>, vector<1x16x16xf32>
    %2 = vector.shape_cast %1 : vector<1x16x16xf32> to vector<16x16xf32>
    %cst = arith.constant dense<0.000000e+00> : vector<16x16xf32>
    %3 = tpu.matmul %0, %2, %cst {dimension_numbers = #tpu.dot_dimension_numbers<[1], [0], [0], [1], [0, 0, 1, 1], [], []>} : vector<16x16xf32>, vector<16x16xf32>, vector<16x16xf32> -> vector<16x16xf32>
    %c0_4 = arith.constant 0 : index
    %c0_5 = arith.constant 0 : index
    %c0_6 = arith.constant 0 : index
    %4 = vector.load %arg3[%c0_4, %c0_5, %c0_6] : memref<2x1x16xf32, #tpu.memory_space<vmem>>, vector<1x1x16xf32>
    %5 = vector.shape_cast %4 : vector<1x1x16xf32> to vector<1x16xf32>
    %6 = vector.broadcast %5 : vector<1x16xf32> to vector<16x16xf32>
    %7 = arith.addf %3, %6 : vector<16x16xf32>
    %cst_7 = arith.constant 0.000000e+00 : f32
    %8 = vector.broadcast %cst_7 : f32 to vector<16x16xf32>
    %9 = arith.maximumf %7, %8 : vector<16x16xf32>
    %10 = vector.shape_cast %9 : vector<16x16xf32> to vector<2x8x16xf32>
    %c0_8 = arith.constant 0 : index
    %c0_9 = arith.constant 0 : index
    %c0_10 = arith.constant 0 : index
    %c0_11 = arith.constant 0 : index
    %11 = vector.load %arg4[%c0_8, %c0_9, %c0_10, %c0_11] : memref<2x2x8x16xf32, #tpu.memory_space<vmem>>, vector<2x1x8x16xf32>
    %12 = vector.shape_cast %11 : vector<2x1x8x16xf32> to vector<2x8x16xf32>
    %13 = vector.shape_cast %10 : vector<2x8x16xf32> to vector<2x1x8x16xf32>
    tpu.vector_store %arg4[%c0_8, %c0_9, %c0_10, %c0_11], %13 {strides = array<i32>} : memref<2x2x8x16xf32, #tpu.memory_space<vmem>>, vector<2x1x8x16xf32>,
    %c1 = arith.constant 1 : index
    %c0_12 = arith.constant 0 : index
    %c0_13 = arith.constant 0 : index
    %14 = vector.load %arg2[%c1, %c0_12, %c0_13] : memref<2x16x16xf32, #tpu.memory_space<vmem>>, vector<1x16x16xf32>
    %15 = vector.shape_cast %14 : vector<1x16x16xf32> to vector<16x16xf32>
    %cst_14 = arith.constant dense<0.000000e+00> : vector<16x16xf32>
    %16 = tpu.matmul %0, %15, %cst_14 {dimension_numbers = #tpu.dot_dimension_numbers<[1], [0], [0], [1], [0, 0, 1, 1], [], []>} : vector<16x16xf32>, vector<16x16xf32>, vector<16x16xf32> -> vector<16x16xf32>
    %c1_15 = arith.constant 1 : index
    %c0_16 = arith.constant 0 : index
    %c0_17 = arith.constant 0 : index
    %17 = vector.load %arg3[%c1_15, %c0_16, %c0_17] : memref<2x1x16xf32, #tpu.memory_space<vmem>>, vector<1x1x16xf32>
    %18 = vector.shape_cast %17 : vector<1x1x16xf32> to vector<1x16xf32>
    %19 = vector.broadcast %18 : vector<1x16xf32> to vector<16x16xf32>
    %20 = arith.addf %16, %19 : vector<16x16xf32>
    %cst_18 = arith.constant 0.000000e+00 : f32
    %21 = vector.broadcast %cst_18 : f32 to vector<16x16xf32>
    %22 = arith.maximumf %20, %21 : vector<16x16xf32>
    %23 = vector.shape_cast %22 : vector<16x16xf32> to vector<2x8x16xf32>
    %c0_19 = arith.constant 0 : index
    %c1_20 = arith.constant 1 : index
    %c0_21 = arith.constant 0 : index
    %c0_22 = arith.constant 0 : index
    %24 = vector.load %arg4[%c0_19, %c1_20, %c0_21, %c0_22] : memref<2x2x8x16xf32, #tpu.memory_space<vmem>>, vector<2x1x8x16xf32>
    %25 = vector.shape_cast %24 : vector<2x1x8x16xf32> to vector<2x8x16xf32>
    %26 = vector.shape_cast %23 : vector<2x8x16xf32> to vector<2x1x8x16xf32>
    tpu.vector_store %arg4[%c0_19, %c1_20, %c0_21, %c0_22], %26 {strides = array<i32>} : memref<2x2x8x16xf32, #tpu.memory_space<vmem>>, vector<2x1x8x16xf32>,
    return
  }
  func.func @transform_0(%arg0: i32) -> (i32, i32) {
    %c0_i32 = arith.constant 0 : i32
    %c0_i32_0 = arith.constant 0 : i32
    return %arg0, %c0_i32 : i32, i32
  }
  func.func @transform_1(%arg0: i32) -> (i32, i32, i32) {
    %c0_i32 = arith.constant 0 : i32
    %c0_i32_0 = arith.constant 0 : i32
    %c0_i32_1 = arith.constant 0 : i32
    %c0_i32_2 = arith.constant 0 : i32
    return %c0_i32, %c0_i32_0, %c0_i32_1 : i32, i32, i32
  }
  func.func @transform_2(%arg0: i32) -> (i32, i32, i32) {
    %c0_i32 = arith.constant 0 : i32
    %c0_i32_0 = arith.constant 0 : i32
    %c0_i32_1 = arith.constant 0 : i32
    %c0_i32_2 = arith.constant 0 : i32
    return %c0_i32, %c0_i32_0, %c0_i32_1 : i32, i32, i32
  }
  func.func @transform_3(%arg0: i32) -> (i32, i32, i32, i32) {
    %c0_i32 = arith.constant 0 : i32
    %c0_i32_0 = arith.constant 0 : i32
    %c0_i32_1 = arith.constant 0 : i32
    %c0_i32_2 = arith.constant 0 : i32
    return %arg0, %c0_i32, %c0_i32_0, %c0_i32_1 : i32, i32, i32, i32
  }
}

</mosaic_0001>

<llo_original>
// kernel: tpu_custom_call.1
$region0: #{tpu_custom_call.1}
  #allocation0 [shape = 'u32[]', space=smem, size = 0x4, offset = 0x4, fixed_abs, tag = 'smem constant byte address 0x4 - core index']
  #allocation1 [shape = 'u32[144,128]{1,0:T(1,128)}', space=vmem, size = 0x12000, scoped, tag = 'internal scratch']
  %s0 = inlined_call_operand.vmem [shape: f32[128,16], index: 0, kind: input, shape index: {}]
  %s1 = inlined_call_operand.vmem [shape: f32[2,16,16], index: 1, kind: input, shape index: {}]
  %s2 = inlined_call_operand.vmem [shape: f32[2,1,16], index: 2, kind: input, shape index: {}]
  %s3 = inlined_call_operand.hbm [shape: f32[16,2,8,16], index: 3, kind: output, shape index: {}]
  %s4 = sld [smem:[#allocation0]]
  $region45: #{tpu_custom_call.1} parent=0
    _
  %s6 = ssub.s32 1, %s4
  %s7 = scalar_select 0, %s6, %s4
  $region1: #{tpu_custom_call.1} parent=0
    #allocation2 [shape = 'u8[32768]{0}', space=vmem, size = 0x8000, scoped, tag = 'output window, operand 0']
    #allocation3 [shape = 's32[2]{0}', space=sflag, size = 0x8, scoped, tag = 'scoped memory for tpu_custom_call.1']
    %8 = vsyncpa [#allocation3], 0
    %s9 = scalar_lea.sflag [#allocation3], 1
    %10 = vsyncpa %s9, 0
    loop: start=0, step=1, limit=10
    $region2: #{tpu_custom_call.1} parent=1 // loop_pre_header
      _
    $region3: #{tpu_custom_call.1} parent=1 // loop_header
      %s12 = sphi 0, %s16
      %p13 = scmp.ge.s32.totalorder %s12, 10
      %s22 = sphi 0, %s24
      %s25 = sphi 0, %s22
      %s26 = sphi 0, %s25
      %s42 = sphi 0, %s26
      %s46 = sphi 0, %s46
      %s48 = sphi 0, %s46
      %s49 = sphi 0, %s48
      %s63 = sphi 0, %s49
      %s67 = sphi 0, %s67
      %s69 = sphi 0, %s67
      %s70 = sphi 0, %s69
      %s84 = sphi 0, %s70
      %s90 = sphi 0, %s92
      %s93 = sphi 0, %s90
      %s94 = sphi 0, %s93
      %s110 = sphi 0, %s94
    $region4: #{tpu_custom_call.1} parent=1 // loop_header_branch
      %15 = sbr.rel (%p13) target = $region8
    $region5: #{tpu_custom_call.1} parent=1 // loop_body
      %s17 = ssub.s32 %s12, 1
      %s18 = ssub.s32 %s12, 2
      %s19 = sadd.s32 %s12, 1
      %s20 = ssub.s32 %s12, %s19
      %p21 = scmp.eq.s32.totalorder %s20, 0
      %s23 = sadd.s32 %s22, 1
      %s24 = scalar_select %p21, %s22, %s23
      %p27 = pneg %p21
      %p28 = scmp.eq.s32.totalorder %s12, 7
      %p29 = por %p27, %p28
      %p30 = scmp.ne.s32.totalorder %s22, %s25
      %p31 = scmp.eq.s32.totalorder %s12, 0
      %p32 = por %p30, %p31
      %p33 = scmp.ne.s32.totalorder %s22, %s25
      %p34 = scmp.eq.s32.totalorder %s17, 7
      %p35 = por %p33, %p34
      %p36 = scmp.ne.s32.totalorder %s25, %s26
      %p37 = scmp.eq.s32.totalorder %s17, 0
      %p38 = por %p36, %p37
      %p39 = scmp.ne.s32.totalorder %s25, %s26
      %p40 = scmp.eq.s32.totalorder %s18, 7
      %p41 = por %p39, %p40
      %p43 = scmp.ne.s32.totalorder %s26, %s42
      %p44 = scmp.eq.s32.totalorder %s18, 0
      %p45 = por %p43, %p44
      %s47 = sadd.s32 %s46, 1
      %p50 = scmp.eq.s32.totalorder %s12, 7
      %p51 = scmp.ne.s32.totalorder %s46, %s48
      %p52 = scmp.eq.s32.totalorder %s12, 0
      %p53 = por %p51, %p52
      %p54 = scmp.ne.s32.totalorder %s46, %s48
      %p55 = scmp.eq.s32.totalorder %s17, 7
      %p56 = por %p54, %p55
      %p57 = scmp.ne.s32.totalorder %s48, %s49
      %p58 = scmp.eq.s32.totalorder %s17, 0
      %p59 = por %p57, %p58
      %p60 = scmp.ne.s32.totalorder %s48, %s49
      %p61 = scmp.eq.s32.totalorder %s18, 7
      %p62 = por %p60, %p61
      %p64 = scmp.ne.s32.totalorder %s49, %s63
      %p65 = scmp.eq.s32.totalorder %s18, 0
      %p66 = por %p64, %p65
      %s68 = sadd.s32 %s67, 1
      %p71 = scmp.eq.s32.totalorder %s12, 7
      %p72 = scmp.ne.s32.totalorder %s67, %s69
      %p73 = scmp.eq.s32.totalorder %s12, 0
      %p74 = por %p72, %p73
      %p75 = scmp.ne.s32.totalorder %s67, %s69
      %p76 = scmp.eq.s32.totalorder %s17, 7
      %p77 = por %p75, %p76
      %p78 = scmp.ne.s32.totalorder %s69, %s70
      %p79 = scmp.eq.s32.totalorder %s17, 0
      %p80 = por %p78, %p79
      %p81 = scmp.ne.s32.totalorder %s69, %s70
      %p82 = scmp.eq.s32.totalorder %s18, 7
      %p83 = por %p81, %p82
      %p85 = scmp.ne.s32.totalorder %s70, %s84
      %p86 = scmp.eq.s32.totalorder %s18, 0
      %p87 = por %p85, %p86
      %s88 = ssub.s32 %s12, %s19
      %p89 = scmp.eq.s32.totalorder %s88, 0
      %s91 = sadd.s32 %s90, 1
      %s92 = scalar_select %p89, %s90, %s91
      %p95 = pneg %p89
      %p96 = scmp.eq.s32.totalorder %s12, 7
      %p97 = por %p95, %p96
      %p98 = scmp.ne.s32.totalorder %s90, %s93
      %p99 = scmp.eq.s32.totalorder %s12, 0
      %p100 = por %p98, %p99
      %p101 = scmp.ne.s32.totalorder %s90, %s93
      %p102 = scmp.eq.s32.totalorder %s17, 7
      %p103 = por %p101, %p102
      %p104 = scmp.ne.s32.totalorder %s93, %s94
      %p105 = scmp.eq.s32.totalorder %s17, 0
      %p106 = por %p104, %p105
      %p107 = scmp.ne.s32.totalorder %s93, %s94
      %p108 = scmp.eq.s32.totalorder %s18, 7
      %p109 = por %p107, %p108
      %p111 = scmp.ne.s32.totalorder %s94, %s110
      %p112 = scmp.eq.s32.totalorder %s18, 0
      %p113 = por %p111, %p112
      %p114 = scmp.le.s32.totalorder 1, %s12
      %p115 = scmp.lt.s32.totalorder %s12, 9
      %p116 = pnand %p114, %p115
      %p117 = pneg %p116
      // Predicated region
      $region9: #{tpu_custom_call.1} parent=5 // pred_check
        _
      $region10: #{tpu_custom_call.1} parent=5 // pred_check_branch
        %119 = sbr.rel (%p116) target = $region12
      $region11: #{tpu_custom_call.1} parent=5 // pred_region
        %s120 = ssub.s32 %s12, 1
        // Predicated region
        $region13: #{tpu_custom_call.1} parent=11 // pred_check
          %p121 = pneg %p59
        $region14: #{tpu_custom_call.1} parent=11 // pred_check_branch
          %123 = sbr.rel (%p121) target = $region16
        $region15: #{tpu_custom_call.1} parent=11 // pred_region
          _
        $region16: #{tpu_custom_call.1} parent=11 // pred_fallthru
          _
        // Predicated region
        $region17: #{tpu_custom_call.1} parent=11 // pred_check
          %p124 = pneg %p80
        $region18: #{tpu_custom_call.1} parent=11 // pred_check_branch
          %126 = sbr.rel (%p124) target = $region20
        $region19: #{tpu_custom_call.1} parent=11 // pred_region
          _
        $region20: #{tpu_custom_call.1} parent=11 // pred_fallthru
          _
      $region12: #{tpu_custom_call.1} parent=5 // pred_fallthru
        _
      %p127 = scmp.lt.s32.totalorder %s12, 8
      // Predicated region
      $region21: #{tpu_custom_call.1} parent=5 // pred_check
        %p128 = pneg %p127
      $region22: #{tpu_custom_call.1} parent=5 // pred_check_branch
        %130 = sbr.rel (%p128) target = $region24
      $region23: #{tpu_custom_call.1} parent=5 // pred_region
        // Predicated region
        $region25: #{tpu_custom_call.1} parent=23 // pred_check
          %p131 = pneg %p32
        $region26: #{tpu_custom_call.1} parent=23 // pred_check_branch
          %133 = sbr.rel (%p131) target = $region28
        $region27: #{tpu_custom_call.1} parent=23 // pred_region
          %s134 = smul.u32 2, %s12
          %p135 = scmp.lt.s32.totalorder %s134, 15
          %s136 = scalar_select %p135, %s134, 15
          %s137 = smul.addr %s136, 8
          %s138 = scalar_lea.vmem %s0, %s137
          %s139 = smul.u32 2, %s12
        $region28: #{tpu_custom_call.1} parent=23 // pred_fallthru
          _
      $region24: #{tpu_custom_call.1} parent=5 // pred_fallthru
        _
      %p140 = scmp.le.s32.totalorder 1, %s12
      %p141 = scmp.lt.s32.totalorder %s12, 9
      %p142 = pnand %p140, %p141
      %p143 = pneg %p142
      // Predicated region
      $region29: #{tpu_custom_call.1} parent=5 // pred_check
        _
      $region30: #{tpu_custom_call.1} parent=5 // pred_check_branch
        %145 = sbr.rel (%p142) target = $region32
      $region31: #{tpu_custom_call.1} parent=5 // pred_region
        %s146 = ssub.s32 %s12, 1
        %s147 = smul.u32 2, %s17
        %p148 = scmp.lt.s32.totalorder %s147, 15
        %s149 = scalar_select %p148, %s147, 15
        %s150 = smul.addr %s149, 8
        %s151 = scalar_lea.vmem %s0, %s150
        %p152 = pneg %p38
        %p153 = pneg %p35
        %p154 = pneg %p59
        %p155 = pneg %p56
        %p156 = pneg %p80
        %p157 = pneg %p77
        %p158 = pneg %p106
        %p159 = pneg %p103
        %s160 = sand.u32 %s93, 1
        %s161 = scalar_lea.sflag [#allocation3], %s160
        %s162 = sand.u32 %s93, 1
        %s163 = smul.addr %s162, 32
        %s164 = scalar_lea.vmem [#allocation2], %s163
        %s165 = smul.u32 2, %s17
        %p166 = scmp.lt.s32.totalorder %s165, 15
        %s167 = scalar_select %p166, %s165, 15
        %s168 = smul.addr %s167, 8
        %s169 = scalar_lea.vmem %s0, %s168
        %s170 = smul.u32 2, %s17
        %s171 = smul.u32 2, %s17
        %v172 = vld [vmem:[%s169] sm:$0xff]
        %v173 = vld [vmem:[%s169 + $0x8] sm:$0xff]
        %v174 = vld [vmem:[%s1] sm:$0xff]
        %v175 = vld [vmem:[%s1 + $0x8] sm:$0xff]
        %v176 = vld [vmem:[%s2] sm:$0x1]
        %v178 = vlaneseq
        %v179 = vshrl.u32 %v178, 7
        %v180 = vsub.s32 0, %v179
        %v181 = vrot.slane %v176, %v180
        %vm183 = vcmask 130048
        %v185 = vsel %vm183, %v172, 0
        %v188 = vsel %vm183, %v173, 0
        %190 = vmatprep.subr.mxu0 0.0
        %191 = vmatpush1.msra.mxu0 0.0
        %192 = vmatprep.subr.mxu0 0.0
        %193 = vmatpush1.msra.mxu0 0.0
        %194 = vmatprep.subr.mxu0 0.0
        %195 = vmatpush1.msra.mxu0 0.0
        %196 = vmatprep.subr.mxu0 0.0
        %197 = vmatpush1.msra.mxu0 0.0
        %198 = vmatprep.subr.mxu0 0.0
        %199 = vmatpush1.msra.mxu0 0.0
        %200 = vmatprep.subr.mxu0 0.0
        %201 = vmatpush1.msra.mxu0 0.0
        %202 = vmatprep.subr.mxu0 0.0
        %203 = vmatpush1.msra.mxu0 0.0
        %204 = vmatprep.subr.mxu0 0.0
        %205 = vmatpush1.msra.mxu0 0.0
        %206 = vmatprep.subr.mxu0 0.0
        %207 = vmatpush1.msra.mxu0 0.0
        %208 = vmatprep.subr.mxu0 0.0
        %209 = vmatpush1.msra.mxu0 0.0
        %210 = vmatprep.subr.mxu0 0.0
        %211 = vmatpush1.msra.mxu0 0.0
        %212 = vmatprep.subr.mxu0 0.0
        %213 = vmatpush1.msra.mxu0 0.0
        %214 = vmatprep.subr.mxu0 0.0
        %215 = vmatpush1.msra.mxu0 0.0
        %216 = vmatprep.subr.mxu0 0.0
        %217 = vmatpush1.msra.mxu0 0.0
        %218 = vmatprep.subr.mxu0 0.0
        %219 = vmatpush1.msra.mxu0 %v175
        %220 = vmatprep.subr.mxu0 0.0
        %221 = vmatpush1.msra.mxu0 %v174
        %222 = vmatprep.subr.mxu0 0.0
        %223 = vmatpush2.msra.mxu0 0.0
        %224 = vmatprep.subr.mxu0 0.0
        %225 = vmatpush2.msra.mxu0 0.0
        %226 = vmatprep.subr.mxu0 0.0
        %227 = vmatpush2.msra.mxu0 0.0
        %228 = vmatprep.subr.mxu0 0.0
        %229 = vmatpush2.msra.mxu0 0.0
        %230 = vmatprep.subr.mxu0 0.0
        %231 = vmatpush2.msra.mxu0 0.0
        %232 = vmatprep.subr.mxu0 0.0
        %233 = vmatpush2.msra.mxu0 0.0
        %234 = vmatprep.subr.mxu0 0.0
        %235 = vmatpush2.msra.mxu0 0.0
        %236 = vmatprep.subr.mxu0 0.0
        %237 = vmatpush2.msra.mxu0 0.0
        %238 = vmatprep.subr.mxu0 0.0
        %239 = vmatpush2.msra.mxu0 0.0
        %240 = vmatprep.subr.mxu0 0.0
        %241 = vmatpush2.msra.mxu0 0.0
        %242 = vmatprep.subr.mxu0 0.0
        %243 = vmatpush2.msra.mxu0 0.0
        %244 = vmatprep.subr.mxu0 0.0
        %245 = vmatpush2.msra.mxu0 0.0
        %246 = vmatprep.subr.mxu0 0.0
        %247 = vmatpush2.msra.mxu0 0.0
        %248 = vmatprep.subr.mxu0 0.0
        %249 = vmatpush2.msra.mxu0 0.0
        %250 = vmatprep.subr.mxu0 0.0
        %251 = vmatpush2.msra.mxu0 0.0
        %252 = vmatprep.subr.mxu0 0.0
        %253 = vmatpush2.msra.mxu0 0.0
        %254 = vmatprep.mubr.f32.mxu0 0.0
        %255 = vmatmul.mubr.f32.gmra.mxu0 %v185
        %v256 = vpop.f32.mrf.mxu0
        %v257 = vadd.f32 %v181, %v256
        %v258 = vpop.f32.mrf.mxu0
        %259 = vmatprep.mubr.f32.mxu0 0.0
        %260 = vmatmul.mubr.f32.gmra.mxu0 %v188
        %v261 = vpop.f32.mrf.mxu0
        %v262 = vadd.f32 %v181, %v261
        %v263 = vpop.f32.mrf.mxu0
        %264 = vdwg.mxu0
        %v265 = vmax.f32 %v257, 0.0
        %v266 = vmax.f32 %v262, 0.0
        %267 = vst.msk [vmem:[%s164] sm:$0xff] %vm183, %v265
        %268 = vst.msk [vmem:[%s164 + $0x10] sm:$0xff] %vm183, %v266
        %s269 = scalar_lea.vmem %s1, 16
        %v270 = vld [vmem:[%s269] sm:$0xff]
        %v271 = vld [vmem:[%s269 + $0x8] sm:$0xff]
        %s272 = scalar_lea.vmem %s2, 1
        %v273 = vld [vmem:[%s272] sm:$0x1]
        %v275 = vlaneseq
        %v276 = vshrl.u32 %v275, 7
        %v277 = vsub.s32 0, %v276
        %v278 = vrot.slane %v273, %v277
        %280 = vmatprep.subr.mxu0 0.0
        %281 = vmatpush1.msra.mxu0 0.0
        %282 = vmatprep.subr.mxu0 0.0
        %283 = vmatpush1.msra.mxu0 0.0
        %284 = vmatprep.subr.mxu0 0.0
        %285 = vmatpush1.msra.mxu0 0.0
        %286 = vmatprep.subr.mxu0 0.0
        %287 = vmatpush1.msra.mxu0 0.0
        %288 = vmatprep.subr.mxu0 0.0
        %289 = vmatpush1.msra.mxu0 0.0
        %290 = vmatprep.subr.mxu0 0.0
        %291 = vmatpush1.msra.mxu0 0.0
        %292 = vmatprep.subr.mxu0 0.0
        %293 = vmatpush1.msra.mxu0 0.0
        %294 = vmatprep.subr.mxu0 0.0
        %295 = vmatpush1.msra.mxu0 0.0
        %296 = vmatprep.subr.mxu0 0.0
        %297 = vmatpush1.msra.mxu0 0.0
        %298 = vmatprep.subr.mxu0 0.0
        %299 = vmatpush1.msra.mxu0 0.0
        %300 = vmatprep.subr.mxu0 0.0
        %301 = vmatpush1.msra.mxu0 0.0
        %302 = vmatprep.subr.mxu0 0.0
        %303 = vmatpush1.msra.mxu0 0.0
        %304 = vmatprep.subr.mxu0 0.0
        %305 = vmatpush1.msra.mxu0 0.0
        %306 = vmatprep.subr.mxu0 0.0
        %307 = vmatpush1.msra.mxu0 0.0
        %308 = vmatprep.subr.mxu0 0.0
        %309 = vmatpush1.msra.mxu0 %v271
        %310 = vmatprep.subr.mxu0 0.0
        %311 = vmatpush1.msra.mxu0 %v270
        %312 = vmatprep.subr.mxu0 0.0
        %313 = vmatpush2.msra.mxu0 0.0
        %314 = vmatprep.subr.mxu0 0.0
        %315 = vmatpush2.msra.mxu0 0.0
        %316 = vmatprep.subr.mxu0 0.0
        %317 = vmatpush2.msra.mxu0 0.0
        %318 = vmatprep.subr.mxu0 0.0
        %319 = vmatpush2.msra.mxu0 0.0
        %320 = vmatprep.subr.mxu0 0.0
        %321 = vmatpush2.msra.mxu0 0.0
        %322 = vmatprep.subr.mxu0 0.0
        %323 = vmatpush2.msra.mxu0 0.0
        %324 = vmatprep.subr.mxu0 0.0
        %325 = vmatpush2.msra.mxu0 0.0
        %326 = vmatprep.subr.mxu0 0.0
        %327 = vmatpush2.msra.mxu0 0.0
        %328 = vmatprep.subr.mxu0 0.0
        %329 = vmatpush2.msra.mxu0 0.0
        %330 = vmatprep.subr.mxu0 0.0
        %331 = vmatpush2.msra.mxu0 0.0
        %332 = vmatprep.subr.mxu0 0.0
        %333 = vmatpush2.msra.mxu0 0.0
        %334 = vmatprep.subr.mxu0 0.0
        %335 = vmatpush2.msra.mxu0 0.0
        %336 = vmatprep.subr.mxu0 0.0
        %337 = vmatpush2.msra.mxu0 0.0
        %338 = vmatprep.subr.mxu0 0.0
        %339 = vmatpush2.msra.mxu0 0.0
        %340 = vmatprep.subr.mxu0 0.0
        %341 = vmatpush2.msra.mxu0 0.0
        %342 = vmatprep.subr.mxu0 0.0
        %343 = vmatpush2.msra.mxu0 0.0
        %344 = vmatprep.mubr.f32.mxu0 0.0
        %345 = vmatmul.mubr.f32.gmra.mxu0 %v185
        %v346 = vpop.f32.mrf.mxu0
        %v347 = vadd.f32 %v278, %v346
        %v348 = vpop.f32.mrf.mxu0
        %349 = vmatprep.mubr.f32.mxu0 0.0
        %350 = vmatmul.mubr.f32.gmra.mxu0 %v188
        %v351 = vpop.f32.mrf.mxu0
        %v352 = vadd.f32 %v278, %v351
        %v353 = vpop.f32.mrf.mxu0
        %354 = vdwg.mxu0
        %v355 = vmax.f32 %v347, 0.0
        %v356 = vmax.f32 %v352, 0.0
        %s357 = scalar_lea.vmem %s164, 8 [#allocation2]
        %358 = vst.msk [vmem:[%s357] sm:$0xff] %vm183, %v355
        %359 = vst.msk [vmem:[%s357 + $0x10] sm:$0xff] %vm183, %v356
        %s360 = sand.u32 %s93, 1
        %s361 = scalar_lea.sflag [#allocation3], %s360
        %s362 = sand.u32 %s93, 1
        %s363 = smul.addr %s362, 32
        %s364 = scalar_lea.vmem [#allocation2], %s363
        // Predicated region
        $region33: #{tpu_custom_call.1} parent=31 // pred_check
          %p365 = pneg %p103
        $region34: #{tpu_custom_call.1} parent=31 // pred_check_branch
          %367 = sbr.rel (%p365) target = $region36
        $region35: #{tpu_custom_call.1} parent=31 // pred_region
          %s368 = smul.u32 2, %s17
          %s370 = ssub.s32 512, 512
          %371 = vsyncadd %s361, %s370
          %s372 = smul.addr %s368, 2
          %s373 = smul.addr %s372, 128
          %s374 = scalar_lea.hbm %s3, %s373
          %s375 = sshll.u32 %s364, 4
          %s376 = int_to_ptr.vmem [resolvable:$true] %s375
          %381 = dma.vmem_to_hbm [thread:$0]  %s376, 512, %s374, %s361, 128, 128, 8
        $region36: #{tpu_custom_call.1} parent=31 // pred_fallthru
          _
      $region32: #{tpu_custom_call.1} parent=5 // pred_fallthru
        _
      %p382 = scmp.le.s32.totalorder 2, %s12
      // Predicated region
      $region37: #{tpu_custom_call.1} parent=5 // pred_check
        %p383 = pneg %p382
      $region38: #{tpu_custom_call.1} parent=5 // pred_check_branch
        %385 = sbr.rel (%p383) target = $region40
      $region39: #{tpu_custom_call.1} parent=5 // pred_region
        %s386 = ssub.s32 %s12, 2
        // Predicated region
        $region41: #{tpu_custom_call.1} parent=39 // pred_check
          %p387 = pneg %p109
        $region42: #{tpu_custom_call.1} parent=39 // pred_check_branch
          %389 = sbr.rel (%p387) target = $region44
        $region43: #{tpu_custom_call.1} parent=39 // pred_region
          %s390 = sand.u32 %s94, 1
          %s391 = scalar_lea.sflag [#allocation3], %s390
          %s392 = sand.u32 %s94, 1
          %s393 = smul.addr %s392, 32
          %s394 = scalar_lea.vmem [#allocation2], %s393
          %395 = dma.done %s391, 512
        $region44: #{tpu_custom_call.1} parent=39 // pred_fallthru
          _
      $region40: #{tpu_custom_call.1} parent=5 // pred_fallthru
        _
    $region6: #{tpu_custom_call.1} parent=1 // loop_footer
      %s16 = sadd.s32 1, %s12
    $region7: #{tpu_custom_call.1} parent=1 // loop_footer_branch
      %11 = sbr.rel target = $region3
    $region8: #{tpu_custom_call.1} parent=1 // loop_exit
      _
    %396 = vsyncpa [#allocation3], 1
    %s397 = scalar_lea.sflag [#allocation3], 1
    %398 = vsyncpa %s397, 1

</llo_original>
